<compile_context>
chip_gen: v7x
topology: tpu7x:2x2x1
jax: 0.10.0
libtpu: 0.0.40
codegen_flags: <defaults>
</compile_context>

<pallas_src>
import math

import jax
import jax.numpy as jnp
from jax.experimental import pallas as pl
from jax.experimental.pallas import tpu as pltpu

K_IN = 1.0                      # self.manifold.k
K_OUT = 1.0                     # self.manifold_out.k (always set in __init__)
SCALE = math.sqrt(K_OUT / K_IN)  # == 1.0, folded at trace time

TARGET_TILE_BYTES = 4 << 20      # ~4 MiB input tile -> ~16 MiB double-buffered in+out
MIN_SPLIT_TILE_BYTES = 2 << 20   # only force >=4 grid steps if split tiles stay >= 2 MiB
VMEM_LIMIT_BYTES = 48 << 20      # explicit scoped-VMEM budget (safe on v5e/v6e/v7x)


def _round_up(n, m):
    return ((n + m - 1) // m) * m


def hyp_activation_kernel(x_ref, o_ref):
    # x_ref / o_ref: (TM, D) tiles; lane 0 is the Lorentz time coordinate.
    x = x_ref[...]
    act = jnp.maximum(x, 0)                       # ReLU in native dtype (all lanes)

    af = act.astype(jnp.float32)                  # up-cast only for square-sum / sqrt
    total = jnp.sum(af * af, axis=-1, keepdims=True)
    t0 = af[:, 0:1]
    x_time = jnp.sqrt(total - t0 * t0 + 1.0)      # space-only sum of squares + 1

    if SCALE != 1.0:                              # never taken here (k_out == k_in == 1)
        act = act * jnp.asarray(SCALE, act.dtype)
        x_time = x_time * SCALE

    o_ref[...] = act.astype(o_ref.dtype)          # one full-tile store
    o_ref[:, 0:1] = x_time.astype(o_ref.dtype)    # overwrite only the time lane


def _choose_row_tile(rows, d, dtype):
    itemsize = jnp.dtype(dtype).itemsize
    sublane = 8 * 4 // itemsize                   # 8 f32, 16 bf16/f16, 32 int8/fp8
    d_lanes = _round_up(d, 128)                   # VMEM lane padding of the last dim
    row_bytes = d_lanes * itemsize

    # ~TARGET_TILE_BYTES per tile: big enough for HBM roofline, small enough that
    # 2 buffers x (in + out) stays well under v7x's 64 MiB VMEM.
    tm = max(sublane, (TARGET_TILE_BYTES // row_bytes) // sublane * sublane)
    tm = min(tm, _round_up(rows, sublane))

    # Prefer >=4 grid steps (>=2 per TensorCore on megacore parts like v7x) when
    # the resulting tiles are still large enough to amortize per-step overhead;
    # skipped for small workloads so single-TC chips (v5e/v6e) pay nothing extra.
    if pl.cdiv(rows, tm) < 4:
        tm4 = _round_up(pl.cdiv(rows, 4), sublane)
        if tm4 * row_bytes >= MIN_SPLIT_TILE_BYTES:
            tm = tm4
    return tm


@jax.jit
def hyp_activation(x):
    """x: [..., D] with lane 0 = Lorentz time coordinate. Returns same shape/dtype."""
    orig_shape = x.shape
    d = orig_shape[-1]
    rows = int(math.prod(orig_shape[:-1]))
    x2 = x.reshape(rows, d)

    tm = _choose_row_tile(rows, d, x.dtype)
    # Partial last block is fine: rows never interact, OOB writes are masked.
    grid = (pl.cdiv(rows, tm),)

    out = pl.pallas_call(
        hyp_activation_kernel,
        out_shape=jax.ShapeDtypeStruct((rows, d), x.dtype),
        grid_spec=pltpu.PrefetchScalarGridSpec(
            num_scalar_prefetch=0,
            grid=grid,
            in_specs=[pl.BlockSpec((tm, d), lambda i: (i, 0))],
            out_specs=pl.BlockSpec((tm, d), lambda i: (i, 0)),
        ),
        compiler_params=pltpu.CompilerParams(
            dimension_semantics=("parallel",),
            vmem_limit_bytes=VMEM_LIMIT_BYTES,
        ),
    )(x2)
    return out.reshape(orig_shape)


def _reference(x):
    x_space = jax.nn.relu(x[..., 1:])
    x_time = jnp.sqrt(jnp.sum(x_space * x_space, axis=-1, keepdims=True) + 1.0)
    return jnp.concatenate([x_time, x_space], axis=-1) * jnp.sqrt(K_OUT / K_IN)


if __name__ == "__main__":
    key = jax.random.PRNGKey(0)

    # Small shapes consistent with the module: batch=2, seq=8,
    # hidden=33 (1 Lorentz time coordinate + 32 spatial features).
    B, S, D = 2, 8, 33
    x = jax.random.normal(key, (B, S, D), dtype=jnp.float32)
    y = jax.block_until_ready(hyp_activation(x))
    assert y.shape == x.shape
    assert jnp.allclose(y, _reference(x), atol=1e-5, rtol=1e-5), "mismatch vs reference"

    # Second shape whose row count does not fill a whole sublane-aligned tile,
    # exercising the masked partial-block path (no wrapper pad/slice).
    B2, S2 = 3, 5   # rows = 15
    x2 = jax.random.normal(jax.random.PRNGKey(1), (B2, S2, D), dtype=jnp.float32)
    y2 = jax.block_until_ready(hyp_activation(x2))
    assert y2.shape == x2.shape
    assert jnp.allclose(y2, _reference(x2), atol=1e-5, rtol=1e-5), "mismatch vs reference (tail)"

    print("KERNEL_OK")
</pallas_src>

<mosaic_0001>
module attributes {stable_mosaic.version = 11 : i64} {
  func.func @hyp_activation_kernel(%arg0: i32, %arg1: memref<16x33xf32, #tpu.memory_space<vmem>>, %arg2: memref<16x33xf32, #tpu.memory_space<vmem>>) attributes {dimension_semantics = [#tpu.dimension_semantics<parallel>], iteration_bounds = array<i64: 1>, scalar_prefetch = 0 : i64, scratch_operands = 0 : i64, tpu.core_type = #tpu.core_type<tc>, window_params = [{transform_indices = @transform_0, window_bounds = array<i64: 16, 33>}, {transform_indices = @transform_1, window_bounds = array<i64: 16, 33>}]} {
    %c0 = arith.constant 0 : index
    %c0_0 = arith.constant 0 : index
    %0 = vector.load %arg1[%c0, %c0_0] : memref<16x33xf32, #tpu.memory_space<vmem>>, vector<16x33xf32>
    %cst = arith.constant 0.000000e+00 : f32
    %1 = vector.broadcast %cst : f32 to vector<16x33xf32>
    %2 = arith.maximumf %0, %1 : vector<16x33xf32>
    %3 = arith.mulf %2, %2 : vector<16x33xf32>
    %cst_1 = arith.constant dense<0.000000e+00> : vector<16xf32>
    %4 = vector.multi_reduction <add>, %3, %cst_1 [1] : vector<16x33xf32> to vector<16xf32>
    %5 = vector.shape_cast %4 : vector<16xf32> to vector<16x1xf32>
    %6 = vector.extract_strided_slice %2 {offsets = [0, 0], sizes = [16, 1], strides = [1, 1]} : vector<16x33xf32> to vector<16x1xf32>
    %7 = arith.mulf %6, %6 : vector<16x1xf32>
    %8 = arith.subf %5, %7 : vector<16x1xf32>
    %cst_2 = arith.constant 1.000000e+00 : f32
    %9 = vector.broadcast %cst_2 : f32 to vector<16x1xf32>
    %10 = arith.addf %8, %9 : vector<16x1xf32>
    %11 = math.sqrt %10 : vector<16x1xf32>
    %c0_3 = arith.constant 0 : index
    %c0_4 = arith.constant 0 : index
    %12 = vector.load %arg2[%c0_3, %c0_4] : memref<16x33xf32, #tpu.memory_space<vmem>>, vector<16x33xf32>
    tpu.vector_store %arg2[%c0_3, %c0_4], %2 {strides = array<i32>} : memref<16x33xf32, #tpu.memory_space<vmem>>, vector<16x33xf32>,
    %c0_5 = arith.constant 0 : index
    %c0_6 = arith.constant 0 : index
    %13 = vector.load %arg2[%c0_5, %c0_6] : memref<16x33xf32, #tpu.memory_space<vmem>>, vector<16x1xf32>
    tpu.vector_store %arg2[%c0_5, %c0_6], %11 {strides = array<i32>} : memref<16x33xf32, #tpu.memory_space<vmem>>, vector<16x1xf32>,
    return
  }
  func.func @transform_0(%arg0: i32) -> (i32, i32) {
    %c0_i32 = arith.constant 0 : i32
    %c0_i32_0 = arith.constant 0 : i32
    return %arg0, %c0_i32 : i32, i32
  }
  func.func @transform_1(%arg0: i32) -> (i32, i32) {
    %c0_i32 = arith.constant 0 : i32
    %c0_i32_0 = arith.constant 0 : i32
    return %arg0, %c0_i32 : i32, i32
  }
}

</mosaic_0001>

<llo_original>
// kernel: hyp_activation.1
$region0: #{hyp_activation.1}
  #allocation0 [shape = 'u32[]', space=smem, size = 0x4, offset = 0x4, fixed_abs, tag = 'smem constant byte address 0x4 - core index']
  #allocation1 [shape = 'u32[144,128]{1,0:T(1,128)}', space=vmem, size = 0x12000, scoped, tag = 'internal scratch']
  %s0 = inlined_call_operand.hbm [shape: f32[16,33], index: 0, kind: input, shape index: {}]
  %s1 = inlined_call_operand.hbm [shape: f32[16,33], index: 1, kind: output, shape index: {}]
  %s2 = sld [smem:[#allocation0]]
  $region18: #{hyp_activation.1} parent=0
    _
  %s4 = ssub.s32 1, %s2
  %s5 = scalar_select 0, %s4, %s2
  $region1: #{hyp_activation.1} parent=0
    #allocation2 [shape = 'u8[8192]{0}', space=vmem, size = 0x2000, scoped, tag = 'input window, operand 0, single buffered']
    #allocation3 [shape = 's32[1]{0}', space=sflag, size = 0x4, scoped, tag = 'scoped memory for hyp_activation.1']
    #allocation4 [shape = 's32[1]{0}', space=sflag, size = 0x4, scoped, tag = 'scoped memory for hyp_activation.1']
    #allocation5 [shape = 'u8[8192]{0}', space=vmem, size = 0x2000, scoped, tag = 'output window, operand 0, single buffered']
    %6 = vsyncpa [#allocation3], 0
    %7 = vsyncpa [#allocation4], 0
    // Predicated region
    $region2: #{hyp_activation.1} parent=1 // pred_check
      _
    $region3: #{hyp_activation.1} parent=1 // pred_check_branch
      %9 = sbr.rel (0) target = $region5
    $region4: #{hyp_activation.1} parent=1 // pred_region
      %s11 = ssub.s32 256, 256
      %12 = vsyncadd [#allocation3], %s11
      %s13 = sshll.u32 [#allocation2], 4
      %s14 = int_to_ptr.vmem [resolvable:$true] %s13
      %19 = dma.hbm_to_vmem [thread:$0]  %s0, 256, %s14, [#allocation3], 128, 128, 8
    $region5: #{hyp_activation.1} parent=1 // pred_fallthru
      _
    // Predicated region
    $region6: #{hyp_activation.1} parent=1 // pred_check
      _
    $region7: #{hyp_activation.1} parent=1 // pred_check_branch
      %21 = sbr.rel (0) target = $region9
    $region8: #{hyp_activation.1} parent=1 // pred_region
      %22 = dma.done [#allocation3], 256
    $region9: #{hyp_activation.1} parent=1 // pred_fallthru
      _
    %v23 = vld [vmem:[#allocation2] sm:$0xff]
    %v24 = vld [vmem:[#allocation2 + $0x8] sm:$0xff]
    %v25 = vmax.f32 %v23, 0.0
    %v26 = vmax.f32 %v24, 0.0
    %v27 = vmul.f32 %v25, %v25
    %v28 = vmul.f32 %v26, %v26
    %vm29 = vcmask 269312
    %v30 = vsel %vm29, %v27, 0.0
    %31 = vadd.xlane.f32.xlu0 %v30
    %v32 = vpop.xlane.xlu0 %31
    %v33 = vsel %vm29, %v28, 0.0
    %34 = vadd.xlane.f32.xlu0 %v33
    %v35 = vpop.xlane.xlu0 %34
    %v36 = vsub.f32 %v32, %v27
    %v37 = vsub.f32 %v35, %v28
    %v38 = vadd.f32 %v36, 1.0
    %v39 = vadd.f32 %v37, 1.0
    %v40 = vrsqrt.pop %v38
    %v41 = vmul.f32 %v38, %v40
    %vm42 = vcmp.eq.f32.partialorder %v38, inf
    %v43 = vsel %vm42, %v38, %v41
    %vm44 = vcmp.eq.f32.partialorder %v38, 0.0
    %v45 = vand.u32 %v38, 2147483648
    %v46 = vsel %vm44, %v45, %v43
    %v47 = vrsqrt.pop %v39
    %v48 = vmul.f32 %v39, %v47
    %vm49 = vcmp.eq.f32.partialorder %v39, inf
    %v50 = vsel %vm49, %v39, %v48
    %vm51 = vcmp.eq.f32.partialorder %v39, 0.0
    %v52 = vand.u32 %v39, 2147483648
    %v53 = vsel %vm51, %v52, %v50
    %54 = vst.msk [vmem:[#allocation5] sm:$0xff] %vm29, %v25
    %55 = vst.msk [vmem:[#allocation5 + $0x8] sm:$0xff] %vm29, %v26
    %vm56 = vcmask 7168
    %57 = vst.msk [vmem:[#allocation5] sm:$0xff] %vm56, %v46
    %58 = vst.msk [vmem:[#allocation5 + $0x8] sm:$0xff] %vm56, %v53
    // Predicated region
    $region10: #{hyp_activation.1} parent=1 // pred_check
      _
    $region11: #{hyp_activation.1} parent=1 // pred_check_branch
      %60 = sbr.rel (0) target = $region13
    $region12: #{hyp_activation.1} parent=1 // pred_region
      %s62 = ssub.s32 256, 256
      %63 = vsyncadd [#allocation4], %s62
      %s64 = sshll.u32 [#allocation5], 4
      %s65 = int_to_ptr.vmem [resolvable:$true] %s64
      %70 = dma.vmem_to_hbm [thread:$0]  %s65, 256, %s1, [#allocation4], 128, 128, 8
    $region13: #{hyp_activation.1} parent=1 // pred_fallthru
      _
    // Predicated region
    $region14: #{hyp_activation.1} parent=1 // pred_check
      _
    $region15: #{hyp_activation.1} parent=1 // pred_check_branch
      %72 = sbr.rel (0) target = $region17
    $region16: #{hyp_activation.1} parent=1 // pred_region
      %73 = dma.done [#allocation4], 256
    $region17: #{hyp_activation.1} parent=1 // pred_fallthru
      _
    %74 = vsyncpa [#allocation3], 1
    %75 = vsyncpa [#allocation4], 1

</llo_original>
